<compile_context>
chip_gen: v7x
topology: tpu7x:2x2x1
jax: 0.10.0
libtpu: 0.0.40
codegen_flags: <defaults>
</compile_context>

<pallas_src>
import functools

import jax
import jax.numpy as jnp
from jax.experimental import pallas as pl
from jax.experimental.pallas import tpu as pltpu


def _round_up(x, m):
    return ((x + m - 1) // m) * m


def _vmem_capacity_bytes():
    # v5e/v6e: 128 MiB, v7x: 64 MiB per TensorCore.  Conservative fallback.
    try:
        return int(pltpu.get_tpu_info().vmem_capacity_bytes)
    except Exception:
        return 64 * 1024 * 1024


# ----------------------------- kernels ---------------------------------------

def _pe_kernel_single_k(x_ref, w_ref, b_ref, o_ref):
    # x_ref: (tm, K_pad) bf16 (streamed), w_ref: (K_pad, E_pad) bf16 (resident),
    # b_ref: (1, E_pad) f32 (resident), o_ref: (tm, E_pad).
    o_ref[...] = (
        jnp.dot(x_ref[...], w_ref[...], preferred_element_type=jnp.float32)
        + b_ref[...]
    ).astype(o_ref.dtype)


def _pe_kernel_k_grid(x_ref, w_ref, b_ref, o_ref, acc_ref):
    # Fallback for very large K: reduction axis last, bias folded into init.
    k = pl.program_id(1)

    @pl.when(k == 0)
    def _():
        acc_ref[...] = jnp.broadcast_to(b_ref[...], acc_ref.shape)

    acc_ref[...] += jnp.dot(x_ref[...], w_ref[...],
                            preferred_element_type=jnp.float32)

    @pl.when(k == pl.num_programs(1) - 1)
    def _():
        o_ref[...] = acc_ref[...].astype(o_ref.dtype)


# ----------------------------- wrapper ----------------------------------------

@functools.partial(jax.jit, static_argnames=("patch_size",))
def patch_embedding_forward(x, weight, bias, patch_size):
    """Matches PyTorch PatchEmbedding.forward.

    x:      (B, C, D, H, W)   float32 (NCDHW)
    weight: (E, C, p, p, p)   Conv3d weight
    bias:   (E,)              Conv3d bias
    returns (B, N, E) with N = (D//p)*(H//p)*(W//p)

    NOTE: operands are down-cast to bf16 for the MXU with f32 accumulation
    (standard TPU recipe); will not bit-match an f32 torch Conv3d.
    """
    p = patch_size
    B, C, D, H, W = x.shape
    if (D % p) or (H % p) or (W % p):
        raise ValueError("D, H, W must be divisible by patch_size")
    E = weight.shape[0]
    Nd, Nh, Nw = D // p, H // p, W // p
    N = Nd * Nh * Nw
    K = C * p * p * p
    M = B * N
    out_dtype = x.dtype
    out_bytes = jnp.dtype(out_dtype).itemsize

    # --- layout glue: cast to bf16 FIRST so the materialized transpose copy
    # --- is half-size; patch index n = d*Nh*Nw + h*Nw + w matches Conv3d+flatten.
    x16 = x.astype(jnp.bfloat16)
    xp = x16.reshape(B, C, Nd, p, Nh, p, Nw, p)
    xp = xp.transpose(0, 2, 4, 6, 1, 3, 5, 7)          # (B, Nd, Nh, Nw, C, p, p, p)
    patches = xp.reshape(M, K)                         # (M, K) bf16
    # weight (E, C, p, p, p) -> (K, E); K ordering (C, pd, ph, pw) matches patches
    w2d = weight.reshape(E, K).T.astype(jnp.bfloat16)  # (K, E) bf16

    # --- minimal padding: K up to a multiple of 128, E lane-dense ------------
    K_pad = _round_up(K, 128)
    E_pad = _round_up(E, 128)
    if K_pad != K:
        patches = jnp.pad(patches, ((0, 0), (0, K_pad - K)))
    if (K_pad != K) or (E_pad != E):
        w2d = jnp.pad(w2d, ((0, K_pad - K), (0, E_pad - E)))
    b2d = bias.astype(jnp.float32)
    if E_pad != E:
        b2d = jnp.pad(b2d, (0, E_pad - E))
    b2d = b2d.reshape(1, E_pad)

    # --- generation-aware VMEM budget ----------------------------------------
    vmem_cap = _vmem_capacity_bytes()
    budget = max(16 * 1024 * 1024, int(0.55 * vmem_cap))   # ~35 MiB v7x, ~70 MiB v6e/v5e

    def foot_single(tm):
        return (2 * tm * K_pad * 2          # double-buffered bf16 patches
                + K_pad * E_pad * 2         # resident bf16 weight
                + 2 * tm * E_pad * out_bytes  # double-buffered output
                + 2 * E_pad * 4)            # bias

    tm_single = None
    for cand in (2048, 1024, 512, 256, 128, 64, 32, 16):
        if foot_single(cand) <= budget:
            tm_single = cand
            break

    if tm_single is not None:
        # ---------- preferred path: weight resident, no K grid axis ----------
        tm = min(tm_single, _round_up(M, 16))
        # v7x has 2 TensorCores: give the parallel M axis >= 2 tiles when worthwhile
        if M > 128 and pl.cdiv(M, tm) < 2:
            tm = max(16, _round_up(pl.cdiv(M, 2), 16))
        vmem_limit = int(min(budget, max(16 * 1024 * 1024,
                                         int(1.5 * foot_single(tm)))))

        out2d = pl.pallas_call(
            _pe_kernel_single_k,
            out_shape=jax.ShapeDtypeStruct((M, E_pad), out_dtype),
            grid=(pl.cdiv(M, tm),),
            in_specs=[
                pl.BlockSpec((tm, K_pad), lambda i: (i, 0)),      # streamed patches
                pl.BlockSpec((K_pad, E_pad), lambda i: (0, 0)),   # resident weight
                pl.BlockSpec((1, E_pad), lambda i: (0, 0)),       # resident bias
            ],
            out_specs=pl.BlockSpec((tm, E_pad), lambda i: (i, 0)),
            compiler_params=pltpu.CompilerParams(
                dimension_semantics=("parallel",),
                vmem_limit_bytes=vmem_limit,
            ),
        )(patches, w2d, b2d)
    else:
        # ---------- fallback: very large K, stream weight over a K grid ------
        tk = 512

        def foot_kgrid(tm):
            return (2 * (tm * tk * 2 + tk * E_pad * 2 + tm * E_pad * out_bytes)
                    + tm * E_pad * 4 + 2 * E_pad * 4)

        tm = 512
        while foot_kgrid(tm) > budget and tm > 16:
            tm //= 2
        tm = min(tm, _round_up(M, 16))
        if M > 128 and pl.cdiv(M, tm) < 2:
            tm = max(16, _round_up(pl.cdiv(M, 2), 16))

        Kg = _round_up(K_pad, tk)
        if Kg != K_pad:   # zero-pad K so the ragged reduction block is harmless
            patches = jnp.pad(patches, ((0, 0), (0, Kg - K_pad)))
            w2d = jnp.pad(w2d, ((0, Kg - K_pad), (0, 0)))
        vmem_limit = int(min(budget, max(16 * 1024 * 1024,
                                         int(1.5 * foot_kgrid(tm)))))

        out2d = pl.pallas_call(
            _pe_kernel_k_grid,
            out_shape=jax.ShapeDtypeStruct((M, E_pad), out_dtype),
            grid=(pl.cdiv(M, tm), Kg // tk),
            in_specs=[
                pl.BlockSpec((tm, tk), lambda i, k: (i, k)),
                pl.BlockSpec((tk, E_pad), lambda i, k: (k, 0)),
                pl.BlockSpec((1, E_pad), lambda i, k: (0, 0)),
            ],
            out_specs=pl.BlockSpec((tm, E_pad), lambda i, k: (i, 0)),
            scratch_shapes=[pltpu.VMEM((tm, E_pad), jnp.float32)],
            compiler_params=pltpu.CompilerParams(
                dimension_semantics=("parallel", "arbitrary"),
                vmem_limit_bytes=vmem_limit,
            ),
        )(patches, w2d, b2d)

    if E_pad != E:
        out2d = out2d[:, :E]
    return out2d.reshape(B, N, E)


if __name__ == "__main__":
    # Small, module-consistent shapes: Conv3d input is (B, C, D, H, W)
    B, C, D, H, W = 2, 4, 8, 8, 8
    patch_size = 4
    embed_dim = 32

    key = jax.random.PRNGKey(0)
    kx, kw, kb = jax.random.split(key, 3)

    x = jax.random.normal(kx, (B, C, D, H, W), dtype=jnp.float32)
    weight = jax.random.normal(
        kw, (embed_dim, C, patch_size, patch_size, patch_size),
        dtype=jnp.float32) * 0.02
    bias = jax.random.normal(kb, (embed_dim,), dtype=jnp.float32) * 0.02

    out = patch_embedding_forward(x, weight, bias, patch_size)
    out = jax.block_until_ready(out)

    N = (D // patch_size) * (H // patch_size) * (W // patch_size)
    assert out.shape == (B, N, embed_dim)

    # reference check in plain JAX (f32 einsum); bf16 MXU operands -> relaxed tol
    p = patch_size
    xp = x.reshape(B, C, D // p, p, H // p, p, W // p, p)
    xp = xp.transpose(0, 2, 4, 6, 1, 3, 5, 7).reshape(B, -1, C * p * p * p)
    ref = jnp.einsum("bnk,ek->bne", xp, weight.reshape(embed_dim, -1)) + bias
    assert jnp.allclose(out, ref, atol=2e-2, rtol=2e-2)

    print("KERNEL_OK")
</pallas_src>

<mosaic_0001>
module attributes {stable_mosaic.version = 11 : i64} {
  func.func @_pe_kernel_single_k(%arg0: i32, %arg1: memref<16x256xbf16, #tpu.memory_space<vmem>>, %arg2: memref<256x128xbf16, #tpu.memory_space<vmem>>, %arg3: memref<1x128xf32, #tpu.memory_space<vmem>>, %arg4: memref<16x128xf32, #tpu.memory_space<vmem>>) attributes {dimension_semantics = [#tpu.dimension_semantics<parallel>], iteration_bounds = array<i64: 1>, scalar_prefetch = 0 : i64, scratch_operands = 0 : i64, tpu.core_type = #tpu.core_type<tc>, window_params = [{transform_indices = @transform_0, window_bounds = array<i64: 16, 256>}, {pipeline_mode = #tpu.pipeline_mode<synchronous>, transform_indices = @transform_1, window_bounds = array<i64: 256, 128>}, {pipeline_mode = #tpu.pipeline_mode<synchronous>, transform_indices = @transform_2, window_bounds = array<i64: 1, 128>}, {transform_indices = @transform_3, window_bounds = array<i64: 16, 128>}]} {
    %c0 = arith.constant 0 : index
    %c0_0 = arith.constant 0 : index
    %0 = vector.load %arg1[%c0, %c0_0] : memref<16x256xbf16, #tpu.memory_space<vmem>>, vector<16x256xbf16>
    %c0_1 = arith.constant 0 : index
    %c0_2 = arith.constant 0 : index
    %1 = vector.load %arg2[%c0_1, %c0_2] : memref<256x128xbf16, #tpu.memory_space<vmem>>, vector<256x128xbf16>
    %cst = arith.constant dense<0.000000e+00> : vector<16x128xf32>
    %2 = tpu.matmul %0, %1, %cst {dimension_numbers = #tpu.dot_dimension_numbers<[1], [0], [0], [1], [0, 0, 1, 1], [], []>} : vector<16x256xbf16>, vector<256x128xbf16>, vector<16x128xf32> -> vector<16x128xf32>
    %c0_3 = arith.constant 0 : index
    %c0_4 = arith.constant 0 : index
    %3 = vector.load %arg3[%c0_3, %c0_4] : memref<1x128xf32, #tpu.memory_space<vmem>>, vector<1x128xf32>
    %4 = vector.broadcast %3 : vector<1x128xf32> to vector<16x128xf32>
    %5 = arith.addf %2, %4 : vector<16x128xf32>
    %c0_5 = arith.constant 0 : index
    %c0_6 = arith.constant 0 : index
    %6 = vector.load %arg4[%c0_5, %c0_6] : memref<16x128xf32, #tpu.memory_space<vmem>>, vector<16x128xf32>
    tpu.vector_store %arg4[%c0_5, %c0_6], %5 {strides = array<i32>} : memref<16x128xf32, #tpu.memory_space<vmem>>, vector<16x128xf32>,
    return
  }
  func.func @transform_0(%arg0: i32) -> (i32, i32) {
    %c0_i32 = arith.constant 0 : i32
    %c0_i32_0 = arith.constant 0 : i32
    return %arg0, %c0_i32 : i32, i32
  }
  func.func @transform_1(%arg0: i32) -> (i32, i32) {
    %c0_i32 = arith.constant 0 : i32
    %c0_i32_0 = arith.constant 0 : i32
    %c0_i32_1 = arith.constant 0 : i32
    return %c0_i32, %c0_i32_0 : i32, i32
  }
  func.func @transform_2(%arg0: i32) -> (i32, i32) {
    %c0_i32 = arith.constant 0 : i32
    %c0_i32_0 = arith.constant 0 : i32
    %c0_i32_1 = arith.constant 0 : i32
    return %c0_i32, %c0_i32_0 : i32, i32
  }
  func.func @transform_3(%arg0: i32) -> (i32, i32) {
    %c0_i32 = arith.constant 0 : i32
    %c0_i32_0 = arith.constant 0 : i32
    return %arg0, %c0_i32 : i32, i32
  }
}

</mosaic_0001>

<llo_original>
// kernel: patch_embedding_forward.1
$region0: #{patch_embedding_forward.1}
  #allocation0 [shape = 'u32[]', space=smem, size = 0x4, offset = 0x4, fixed_abs, tag = 'smem constant byte address 0x4 - core index']
  #allocation1 [shape = 'u32[144,128]{1,0:T(1,128)}', space=vmem, size = 0x12000, scoped, tag = 'internal scratch']
  %s0 = inlined_call_operand.vmem [shape: bf16[16,256], index: 0, kind: input, shape index: {}]
  %s1 = inlined_call_operand.vmem [shape: bf16[256,128], index: 1, kind: input, shape index: {}]
  %s2 = inlined_call_operand.vmem [shape: f32[1,128], index: 2, kind: input, shape index: {}]
  %s3 = inlined_call_operand.vmem [shape: f32[16,128], index: 3, kind: output, shape index: {}]
  %s4 = sld [smem:[#allocation0]]
  $region22: #{patch_embedding_forward.1} parent=0
    _
  %s6 = ssub.s32 1, %s4
  %s7 = scalar_select 0, %s6, %s4
  // Predicated region
  $region2: #{patch_embedding_forward.1} parent=0 // pred_check
    _
  $region3: #{patch_embedding_forward.1} parent=0 // pred_check_branch
    %9 = sbr.rel (0) target = $region5
  $region4: #{patch_embedding_forward.1} parent=0 // pred_region
    _
  $region5: #{patch_embedding_forward.1} parent=0 // pred_fallthru
    _
  // Predicated region
  $region6: #{patch_embedding_forward.1} parent=0 // pred_check
    _
  $region7: #{patch_embedding_forward.1} parent=0 // pred_check_branch
    %11 = sbr.rel (0) target = $region9
  $region8: #{patch_embedding_forward.1} parent=0 // pred_region
    _
  $region9: #{patch_embedding_forward.1} parent=0 // pred_fallthru
    _
  // Predicated region
  $region10: #{patch_embedding_forward.1} parent=0 // pred_check
    _
  $region11: #{patch_embedding_forward.1} parent=0 // pred_check_branch
    %13 = sbr.rel (0) target = $region13
  $region12: #{patch_embedding_forward.1} parent=0 // pred_region
    _
  $region13: #{patch_embedding_forward.1} parent=0 // pred_fallthru
    _
  %v15 = vld [vmem:[%s0] sm:$0xff]
  %v16 = vld [vmem:[%s0 + $0x8] sm:$0xff]
  %v17 = vld [vmem:[%s1] sm:$0xf]
  %v18 = vld [vmem:[%s1 + $0x4] sm:$0xf]
  %v19 = vld [vmem:[%s1 + $0x8] sm:$0xf]
  %v20 = vld [vmem:[%s1 + $0xc] sm:$0xf]
  %v21 = vld [vmem:[%s1 + $0x10] sm:$0xf]
  %v22 = vld [vmem:[%s1 + $0x14] sm:$0xf]
  %v23 = vld [vmem:[%s1 + $0x18] sm:$0xf]
  %v24 = vld [vmem:[%s1 + $0x1c] sm:$0xf]
  %v25 = vld [vmem:[%s1 + $0x20] sm:$0xf]
  %v26 = vld [vmem:[%s1 + $0x24] sm:$0xf]
  %v27 = vld [vmem:[%s1 + $0x28] sm:$0xf]
  %v28 = vld [vmem:[%s1 + $0x2c] sm:$0xf]
  %v29 = vld [vmem:[%s1 + $0x30] sm:$0xf]
  %v30 = vld [vmem:[%s1 + $0x34] sm:$0xf]
  %v31 = vld [vmem:[%s1 + $0x38] sm:$0xf]
  %v32 = vld [vmem:[%s1 + $0x3c] sm:$0xf]
  %v33 = vld [vmem:[%s1 + $0x40] sm:$0xf]
  %v34 = vld [vmem:[%s1 + $0x44] sm:$0xf]
  %v35 = vld [vmem:[%s1 + $0x48] sm:$0xf]
  %v36 = vld [vmem:[%s1 + $0x4c] sm:$0xf]
  %v37 = vld [vmem:[%s1 + $0x50] sm:$0xf]
  %v38 = vld [vmem:[%s1 + $0x54] sm:$0xf]
  %v39 = vld [vmem:[%s1 + $0x58] sm:$0xf]
  %v40 = vld [vmem:[%s1 + $0x5c] sm:$0xf]
  %v41 = vld [vmem:[%s1 + $0x60] sm:$0xf]
  %v42 = vld [vmem:[%s1 + $0x64] sm:$0xf]
  %v43 = vld [vmem:[%s1 + $0x68] sm:$0xf]
  %v44 = vld [vmem:[%s1 + $0x6c] sm:$0xf]
  %v45 = vld [vmem:[%s1 + $0x70] sm:$0xf]
  %v46 = vld [vmem:[%s1 + $0x74] sm:$0xf]
  %v47 = vld [vmem:[%s1 + $0x78] sm:$0xf]
  %v48 = vld [vmem:[%s1 + $0x7c] sm:$0xf]
  %v49 = vld [vmem:[%s2] sm:$0x1]
  %v51 = vlaneseq
  %v52 = vshrl.u32 %v51, 7
  %v53 = vsub.s32 0, %v52
  %v54 = vrot.slane %v49, %v53
  %v58 = vunpack.c.l.b16 %v15
  %v59 = vunpack.c.h.b16 %v15
  %v60 = vunpack.c.l.b16 %v16
  %v61 = vunpack.c.h.b16 %v16
  %v62 = vpack.c.b16 %v60, %v58
  %v63 = vpack.c.b16 %v61, %v59
  %v98 = vunpack.c.l.b16 %v17
  %v99 = vunpack.c.l.b16 %v18
  %v100 = vunpack.c.l.b16 %v19
  %v101 = vunpack.c.l.b16 %v20
  %v102 = vunpack.c.l.b16 %v21
  %v103 = vunpack.c.l.b16 %v22
  %v104 = vunpack.c.l.b16 %v23
  %v105 = vunpack.c.l.b16 %v24
  %v106 = vunpack.c.l.b16 %v25
  %v107 = vunpack.c.l.b16 %v26
  %v108 = vunpack.c.l.b16 %v27
  %v109 = vunpack.c.l.b16 %v28
  %v110 = vunpack.c.l.b16 %v29
  %v111 = vunpack.c.l.b16 %v30
  %v112 = vunpack.c.l.b16 %v31
  %v113 = vunpack.c.l.b16 %v32
  %v114 = vunpack.c.l.b16 %v33
  %v115 = vunpack.c.l.b16 %v34
  %v116 = vunpack.c.l.b16 %v35
  %v117 = vunpack.c.l.b16 %v36
  %v118 = vunpack.c.l.b16 %v37
  %v119 = vunpack.c.l.b16 %v38
  %v120 = vunpack.c.l.b16 %v39
  %v121 = vunpack.c.l.b16 %v40
  %v122 = vunpack.c.l.b16 %v41
  %v123 = vunpack.c.l.b16 %v42
  %v124 = vunpack.c.l.b16 %v43
  %v125 = vunpack.c.l.b16 %v44
  %v126 = vunpack.c.l.b16 %v45
  %v127 = vunpack.c.l.b16 %v46
  %v128 = vunpack.c.l.b16 %v47
  %v129 = vunpack.c.l.b16 %v48
  %v130 = vpack.c.b16 %v99, %v98
  %v131 = vpack.c.b16 %v101, %v100
  %v132 = vpack.c.b16 %v103, %v102
  %v133 = vpack.c.b16 %v105, %v104
  %v134 = vpack.c.b16 %v107, %v106
  %v135 = vpack.c.b16 %v109, %v108
  %v136 = vpack.c.b16 %v111, %v110
  %v137 = vpack.c.b16 %v113, %v112
  %v138 = vpack.c.b16 %v115, %v114
  %v139 = vpack.c.b16 %v117, %v116
  %v140 = vpack.c.b16 %v119, %v118
  %v141 = vpack.c.b16 %v121, %v120
  %v142 = vpack.c.b16 %v123, %v122
  %v143 = vpack.c.b16 %v125, %v124
  %v144 = vpack.c.b16 %v127, %v126
  %v145 = vpack.c.b16 %v129, %v128
  %162 = vmatprep.subr.bf16.mxu0 0
  %163 = vmatpush1.bf16.msra.mxu0 %v130
  %164 = vmatprep.subr.bf16.mxu0 0
  %165 = vmatpush1.bf16.msra.mxu0 %v131
  %166 = vmatprep.subr.bf16.mxu0 0
  %167 = vmatpush1.bf16.msra.mxu0 %v132
  %168 = vmatprep.subr.bf16.mxu0 0
  %169 = vmatpush1.bf16.msra.mxu0 %v133
  %170 = vmatprep.subr.bf16.mxu0 0
  %171 = vmatpush1.bf16.msra.mxu0 %v134
  %172 = vmatprep.subr.bf16.mxu0 0
  %173 = vmatpush1.bf16.msra.mxu0 %v135
  %174 = vmatprep.subr.bf16.mxu0 0
  %175 = vmatpush1.bf16.msra.mxu0 %v136
  %176 = vmatprep.subr.bf16.mxu0 0
  %177 = vmatpush1.bf16.msra.mxu0 %v137
  %178 = vmatprep.subr.bf16.mxu0 0
  %179 = vmatpush1.bf16.msra.mxu0 %v138
  %180 = vmatprep.subr.bf16.mxu0 0
  %181 = vmatpush1.bf16.msra.mxu0 %v139
  %182 = vmatprep.subr.bf16.mxu0 0
  %183 = vmatpush1.bf16.msra.mxu0 %v140
  %184 = vmatprep.subr.bf16.mxu0 0
  %185 = vmatpush1.bf16.msra.mxu0 %v141
  %186 = vmatprep.subr.bf16.mxu0 0
  %187 = vmatpush1.bf16.msra.mxu0 %v142
  %188 = vmatprep.subr.bf16.mxu0 0
  %189 = vmatpush1.bf16.msra.mxu0 %v143
  %190 = vmatprep.subr.bf16.mxu0 0
  %191 = vmatpush1.bf16.msra.mxu0 %v144
  %192 = vmatprep.subr.bf16.mxu0 0
  %193 = vmatpush1.bf16.msra.mxu0 %v145
  %194 = vmatprep.mubr.bf16.mxu0 %v63
  %195 = vmatmul.mubr.bf16.gmra.mrb[0].mxu0 %v62
  %v196 = vpop.f32.mrb[0].mxu0
  %v197 = vadd.f32 %v54, %v196
  %v198 = vpop.f32.mrb[0].mxu0
  %v199 = vpop.f32.mrb[0].mxu0
  %v200 = vadd.f32 %v54, %v199
  %v201 = vpop.f32.mrb[0].mxu0
  %202 = vdwg.mxu0
  %203 = vst [vmem:[%s3] sm:$0xff] %v197
  %204 = vst [vmem:[%s3 + $0x8] sm:$0xff] %v200
  // Predicated region
  $region14: #{patch_embedding_forward.1} parent=0 // pred_check
    _
  $region15: #{patch_embedding_forward.1} parent=0 // pred_check_branch
    %206 = sbr.rel (0) target = $region17
  $region16: #{patch_embedding_forward.1} parent=0 // pred_region
    _
  $region17: #{patch_embedding_forward.1} parent=0 // pred_fallthru
    _
  // Predicated region
  $region18: #{patch_embedding_forward.1} parent=0 // pred_check
    _
  $region19: #{patch_embedding_forward.1} parent=0 // pred_check_branch
    %208 = sbr.rel (0) target = $region21
  $region20: #{patch_embedding_forward.1} parent=0 // pred_region
    _
  $region21: #{patch_embedding_forward.1} parent=0 // pred_fallthru
    _

</llo_original>
